<compile_context>
chip_gen: v6e
topology: v6e:2x2x1
jax: 0.10.0
libtpu: 0.0.40
codegen_flags: <defaults>
</compile_context>

<pallas_src>
import functools
import math

import jax
import jax.numpy as jnp
from jax import lax
from jax.experimental import pallas as pl
from jax.experimental.pallas import tpu as pltpu

_MIB = 1024 * 1024


def _vmem_capacity_bytes() -> int:
    """Per-TensorCore VMEM capacity; conservative (v7x, 64 MiB) fallback."""
    try:
        cap = int(pltpu.get_tpu_info().vmem_capacity_bytes)
        if cap > 0:
            return cap
    except Exception:
        pass
    return 64 * _MIB


def _attention_body(q, kv, mask, out_ref, w_ref, scale, mm_dtype):
    """q: (TB, TQ, H), kv: (TB, Sk, H), mask: None or (1|TB, TQ, Sk)."""
    # Fold 1/sqrt(hidden) into the small (TQ, H) q tile instead of (TQ, Sk) scores.
    q = q * jnp.asarray(scale, q.dtype)
    if mm_dtype is not None and q.dtype != mm_dtype:
        q = q.astype(mm_dtype)
        kv_mm = kv.astype(mm_dtype)
    else:
        kv_mm = kv

    # scores = q @ kv^T : contract last dims directly (no explicit kv transpose);
    # operands stay in their (native or bf16-cast) dtype, f32 MXU accumulation.
    scores = lax.dot_general(
        q, kv_mm, (((2,), (2,)), ((0,), (0,))),
        preferred_element_type=jnp.float32)                 # (TB, TQ, Sk)

    if mask is not None:
        scores = scores + mask.astype(jnp.float32)          # (1,TQ,Sk) broadcasts over TB

    # numerically-stable softmax over the key axis (f32 throughout)
    m = jnp.max(scores, axis=-1, keepdims=True)
    e = jnp.exp(scores - m)
    denom = jnp.sum(e, axis=-1, keepdims=True)
    r = pl.reciprocal(denom, approx=True)                   # EUP slot (otherwise idle)
    r = r * (2.0 - denom * r)                               # one Newton step -> f32 accuracy
    weights = e * r

    # attention_dropout: identity in eval mode.

    out = lax.dot_general(
        weights.astype(kv_mm.dtype), kv_mm, (((2,), (1,)), ((0,), (0,))),
        preferred_element_type=jnp.float32)                 # (TB, TQ, H)

    out_ref[...] = out.astype(out_ref.dtype)
    if w_ref is not None:
        w_ref[...] = weights.astype(w_ref.dtype)


def _attn_kernel(*refs, scale, has_mask, return_weights, mm_dtype):
    if has_mask:
        q_ref, kv_ref, mask_ref = refs[0], refs[1], refs[2]
        rest = refs[3:]
        mask = mask_ref[...]
    else:
        q_ref, kv_ref = refs[0], refs[1]
        rest = refs[2:]
        mask = None
    out_ref = rest[0]
    w_ref = rest[1] if return_weights else None
    _attention_body(q_ref[...], kv_ref[...], mask, out_ref, w_ref, scale, mm_dtype)


def _choose_tiles(B, Sq, Sk, H, q_dt, kv_dt, out_dt, w_dt,
                  has_mask, mask_per_batch, mask_dt, return_weights, budget):
    """Pick (TB, TQ) so the per-step VMEM working set — double-buffered
    BlockSpec buffers PLUS the in-kernel f32 softmax intermediates — fits the
    generation-aware `budget` (derived from this chip's VMEM capacity)."""
    itm = lambda dt: jnp.dtype(dt).itemsize

    def step_bytes(tb, tq):
        b = 2 * tb * tq * H * itm(q_dt)                # q block (x2 pipeline bufs)
        b += 2 * tb * Sk * H * itm(kv_dt)              # kv block (revisited along the
        #   fast query axis, but still allocated double-buffered -> count x2)
        b += 2 * tb * tq * H * itm(out_dt)             # out block
        if return_weights:
            b += 2 * tb * tq * Sk * itm(w_dt)          # weights block
        if has_mask:
            mb = tb if mask_per_batch else 1
            b += 2 * mb * tq * Sk * itm(mask_dt)       # mask block
        b += 3 * tb * tq * Sk * 4                      # f32 scores / exp / weights
        return b

    # Query-tile candidates: divisors of Sq satisfying the sublane constraint
    # (multiple of 8, or the full extent), largest first, capped at 1024.
    tq_cands = sorted(
        {d for d in range(1, Sq + 1)
         if Sq % d == 0 and (d % 8 == 0 or d == Sq) and d <= 1024},
        reverse=True)
    if not tq_cands:
        tq_cands = [Sq]   # awkward Sq (> 1024 with no suitable divisor)

    tb_cands = sorted([d for d in range(1, B + 1) if B % d == 0], reverse=True)
    # Keep >= 2 batch blocks when possible so megacore splits along batch
    # (each TensorCore keeps its own kv block resident across its query tiles).
    pref_tb = [d for d in tb_cands if B // d >= 2] or tb_cands

    for tq in tq_cands:                 # prefer the biggest query tile
        for tb in pref_tb:              # then the most batch packing that fits
            if step_bytes(tb, tq) <= budget:
                return tb, tq

    # Nothing fits the budget: take the smallest legal tile and rely on the
    # raised vmem_limit.  TODO(synk): online-softmax Sk tiling for huge Sk.
    return 1, tq_cands[-1]


def hierarchical_attention_forward(query, key_value_states, attention_mask=None,
                                   layer_idx: int = 0, hidden_size=None,
                                   return_weights: bool = True,
                                   use_bf16_matmul: bool = False):
    """Pallas-backed forward. query: [B, Sq, H], key_value_states: [B, Sk, H],
    attention_mask: None, [Sq, Sk], [1, Sq, Sk] or [B, Sq, Sk] (additive).

    return_weights=False compiles a flash-style variant that skips the
    (B, Sq, Sk) weights writeback (dominant HBM stream) and returns only `out`.
    """
    B, Sq, H = query.shape
    Bk, Sk, Hk = key_value_states.shape
    assert B == Bk and H == Hk
    if hidden_size is None:
        hidden_size = H

    compression_rate = 1.0 + layer_idx / 12 * 3
    if compression_rate > 1.0:
        # TODO(synk): compression helpers are undefined in the reference module.
        raise NotImplementedError("compression path (layer_idx > 0) not implemented")

    scale = 1.0 / math.sqrt(hidden_size)
    out_dtype = query.dtype
    w_dtype = query.dtype          # weights written in the input dtype (matches torch)
    mm_dtype = jnp.bfloat16 if (use_bf16_matmul and query.dtype == jnp.float32) else None

    mask = None
    if attention_mask is not None:
        mask = jnp.asarray(attention_mask)
        if mask.ndim == 2:
            mask = mask[None]
        assert mask.shape[1:] == (Sq, Sk) and mask.shape[0] in (1, B)
    has_mask = mask is not None
    mask_per_batch = has_mask and mask.shape[0] == B

    # Generation-aware VMEM budgeting (v7x: 64 MiB/TC, v5e/v6e: 128 MiB).
    vmem_cap = _vmem_capacity_bytes()
    vmem_limit = (vmem_cap * 9) // 10          # scoped limit handed to Mosaic
    budget = (vmem_cap * 3) // 4               # per-step working-set target

    TB, TQ = _choose_tiles(B, Sq, Sk, H, query.dtype, key_value_states.dtype,
                           out_dtype, w_dtype, has_mask, mask_per_batch,
                           mask.dtype if has_mask else jnp.float32,
                           return_weights, budget)
    grid = (B // TB, Sq // TQ)

    q_spec = pl.BlockSpec((TB, TQ, H), lambda b, i: (b, i, 0))
    # kv block index is constant along the fast query axis -> DMA skipped on revisit.
    kv_spec = pl.BlockSpec((TB, Sk, H), lambda b, i: (b, 0, 0))

    out_spec = pl.BlockSpec((TB, TQ, H), lambda b, i: (b, i, 0))
    if return_weights:
        out_specs = [out_spec, pl.BlockSpec((TB, TQ, Sk), lambda b, i: (b, i, 0))]
        out_shape = (jax.ShapeDtypeStruct((B, Sq, H), out_dtype),
                     jax.ShapeDtypeStruct((B, Sq, Sk), w_dtype))
    else:
        out_specs = out_spec
        out_shape = jax.ShapeDtypeStruct((B, Sq, H), out_dtype)

    in_specs = [q_spec, kv_spec]
    args = [query, key_value_states]
    if has_mask:
        if mask_per_batch:
            m_spec = pl.BlockSpec((TB, TQ, Sk), lambda b, i: (b, i, 0))
        else:
            # shared mask: never broadcast it to (B, Sq, Sk) in HBM; batch block 0
            m_spec = pl.BlockSpec((1, TQ, Sk), lambda b, i: (0, i, 0))
        in_specs.append(m_spec)
        args.append(mask)

    kernel = functools.partial(_attn_kernel, scale=scale, has_mask=has_mask,
                               return_weights=return_weights, mm_dtype=mm_dtype)

    result = pl.pallas_call(
        kernel,
        out_shape=out_shape,
        grid_spec=pltpu.PrefetchScalarGridSpec(
            num_scalar_prefetch=0,
            grid=grid,
            in_specs=in_specs,
            out_specs=out_specs),
        compiler_params=pltpu.CompilerParams(
            dimension_semantics=("parallel", "parallel"),
            vmem_limit_bytes=int(vmem_limit)),
    )(*args)

    if return_weights:
        out, weights = result
        return out, weights
    return result


def _reference(query, key_value_states, attention_mask, hidden_size):
    q = query.astype(jnp.float32)
    kv = key_value_states.astype(jnp.float32)
    scores = jnp.einsum("bqh,bkh->bqk", q, kv) / math.sqrt(hidden_size)
    if attention_mask is not None:
        scores = scores + attention_mask
    w = jax.nn.softmax(scores, axis=-1)
    out = jnp.einsum("bqk,bkh->bqh", w, kv)
    return out, w


if __name__ == "__main__":
    # Small deterministic problem consistent with the module.
    B, Sq, Sk, H = 2, 8, 8, 32
    hidden_size = H
    # NOTE: the module's forward() never applies its query/key/value nn.Linear
    # layers, so no projection parameters are needed for this path.

    key = jax.random.PRNGKey(0)
    k_q, k_kv = jax.random.split(key, 2)
    query = jax.random.normal(k_q, (B, Sq, H), dtype=jnp.float32)
    key_value_states = jax.random.normal(k_kv, (B, Sk, H), dtype=jnp.float32)

    # shared additive attention mask (causal-style), [1, Sq, Sk]
    attention_mask = jnp.where(
        jnp.arange(Sk)[None, :] <= jnp.arange(Sq)[:, None], 0.0, -1e9
    ).astype(jnp.float32)[None, :, :]

    # masked path
    out, weights = hierarchical_attention_forward(
        query, key_value_states, attention_mask, layer_idx=0, hidden_size=hidden_size)
    out, weights = jax.block_until_ready((out, weights))
    ref_out, ref_w = _reference(query, key_value_states, attention_mask, hidden_size)
    assert jnp.allclose(out, ref_out, atol=1e-5, rtol=1e-5)
    assert jnp.allclose(weights, ref_w, atol=1e-5, rtol=1e-5)

    # mask-free path (separate kernel variant: no zero-mask DMA)
    out2, w2 = hierarchical_attention_forward(
        query, key_value_states, None, layer_idx=0, hidden_size=hidden_size)
    out2, w2 = jax.block_until_ready((out2, w2))
    ref_out2, ref_w2 = _reference(query, key_value_states, None, hidden_size)
    assert jnp.allclose(out2, ref_out2, atol=1e-5, rtol=1e-5)
    assert jnp.allclose(w2, ref_w2, atol=1e-5, rtol=1e-5)

    # flash-style variant: weights writeback dropped entirely
    out3 = hierarchical_attention_forward(
        query, key_value_states, attention_mask, layer_idx=0,
        hidden_size=hidden_size, return_weights=False)
    out3 = jax.block_until_ready(out3)
    assert jnp.allclose(out3, ref_out, atol=1e-5, rtol=1e-5)

    print("KERNEL_OK")
</pallas_src>

<mosaic_0001>
module attributes {stable_mosaic.version = 11 : i64} {
  func.func @_attn_kernel(%arg0: i32, %arg1: i32, %arg2: memref<1x8x32xf32, #tpu.memory_space<vmem>>, %arg3: memref<1x8x32xf32, #tpu.memory_space<vmem>>, %arg4: memref<1x8x8xf32, #tpu.memory_space<vmem>>, %arg5: memref<1x8x32xf32, #tpu.memory_space<vmem>>, %arg6: memref<1x8x8xf32, #tpu.memory_space<vmem>>) attributes {dimension_semantics = [#tpu.dimension_semantics<parallel>, #tpu.dimension_semantics<parallel>], iteration_bounds = array<i64: 2, 1>, scalar_prefetch = 0 : i64, scratch_operands = 0 : i64, tpu.core_type = #tpu.core_type<tc>, window_params = [{transform_indices = @transform_0, window_bounds = array<i64: 1, 8, 32>}, {transform_indices = @transform_1, window_bounds = array<i64: 1, 8, 32>}, {transform_indices = @transform_2, window_bounds = array<i64: 1, 8, 8>}, {transform_indices = @transform_3, window_bounds = array<i64: 1, 8, 32>}, {transform_indices = @transform_4, window_bounds = array<i64: 1, 8, 8>}]} {
    %c0 = arith.constant 0 : index
    %c0_0 = arith.constant 0 : index
    %c0_1 = arith.constant 0 : index
    %0 = vector.load %arg4[%c0, %c0_0, %c0_1] : memref<1x8x8xf32, #tpu.memory_space<vmem>>, vector<1x8x8xf32>
    %c0_2 = arith.constant 0 : index
    %c0_3 = arith.constant 0 : index
    %c0_4 = arith.constant 0 : index
    %1 = vector.load %arg2[%c0_2, %c0_3, %c0_4] : memref<1x8x32xf32, #tpu.memory_space<vmem>>, vector<1x8x32xf32>
    %c0_5 = arith.constant 0 : index
    %c0_6 = arith.constant 0 : index
    %c0_7 = arith.constant 0 : index
    %2 = vector.load %arg3[%c0_5, %c0_6, %c0_7] : memref<1x8x32xf32, #tpu.memory_space<vmem>>, vector<1x8x32xf32>
    %cst = arith.constant 0.176776692 : f32
    %3 = vector.broadcast %cst : f32 to vector<1x8x32xf32>
    %4 = arith.mulf %1, %3 : vector<1x8x32xf32>
    %cst_8 = arith.constant dense<0.000000e+00> : vector<1x8x8xf32>
    %5 = tpu.matmul %4, %2, %cst_8 {dimension_numbers = #tpu.dot_dimension_numbers<[2], [2], [1], [1], [0, 0, 0, 1, 1, 1], [0], [0]>} : vector<1x8x32xf32>, vector<1x8x32xf32>, vector<1x8x8xf32> -> vector<1x8x8xf32>
    %6 = arith.addf %5, %0 : vector<1x8x8xf32>
    %cst_9 = arith.constant dense<0xFF800000> : vector<1x8xf32>
    %7 = vector.multi_reduction <maximumf>, %6, %cst_9 [2] : vector<1x8x8xf32> to vector<1x8xf32>
    %8 = vector.shape_cast %7 : vector<1x8xf32> to vector<1x8x1xf32>
    %9 = vector.broadcast %8 : vector<1x8x1xf32> to vector<1x8x8xf32>
    %10 = arith.subf %6, %9 : vector<1x8x8xf32>
    %11 = math.exp %10 : vector<1x8x8xf32>
    %cst_10 = arith.constant dense<0.000000e+00> : vector<1x8xf32>
    %12 = vector.multi_reduction <add>, %11, %cst_10 [2] : vector<1x8x8xf32> to vector<1x8xf32>
    %13 = vector.shape_cast %12 : vector<1x8xf32> to vector<1x8x1xf32>
    %14 = tpu.reciprocal %13 {approx = true} : vector<1x8x1xf32> -> vector<1x8x1xf32>
    %15 = arith.mulf %13, %14 : vector<1x8x1xf32>
    %cst_11 = arith.constant 2.000000e+00 : f32
    %16 = vector.broadcast %cst_11 : f32 to vector<1x8x1xf32>
    %17 = arith.subf %16, %15 : vector<1x8x1xf32>
    %18 = arith.mulf %14, %17 : vector<1x8x1xf32>
    %19 = vector.broadcast %18 : vector<1x8x1xf32> to vector<1x8x8xf32>
    %20 = arith.mulf %11, %19 : vector<1x8x8xf32>
    %cst_12 = arith.constant dense<0.000000e+00> : vector<1x8x32xf32>
    %21 = tpu.matmul %20, %2, %cst_12 {dimension_numbers = #tpu.dot_dimension_numbers<[2], [1], [1], [2], [0, 0, 0, 1, 1, 2], [0], [0]>} : vector<1x8x8xf32>, vector<1x8x32xf32>, vector<1x8x32xf32> -> vector<1x8x32xf32>
    %c0_13 = arith.constant 0 : index
    %c0_14 = arith.constant 0 : index
    %c0_15 = arith.constant 0 : index
    %22 = vector.load %arg5[%c0_13, %c0_14, %c0_15] : memref<1x8x32xf32, #tpu.memory_space<vmem>>, vector<1x8x32xf32>
    tpu.vector_store %arg5[%c0_13, %c0_14, %c0_15], %21 {strides = array<i32>} : memref<1x8x32xf32, #tpu.memory_space<vmem>>, vector<1x8x32xf32>,
    %c0_16 = arith.constant 0 : index
    %c0_17 = arith.constant 0 : index
    %c0_18 = arith.constant 0 : index
    %23 = vector.load %arg6[%c0_16, %c0_17, %c0_18] : memref<1x8x8xf32, #tpu.memory_space<vmem>>, vector<1x8x8xf32>
    tpu.vector_store %arg6[%c0_16, %c0_17, %c0_18], %20 {strides = array<i32>} : memref<1x8x8xf32, #tpu.memory_space<vmem>>, vector<1x8x8xf32>,
    return
  }
  func.func @transform_0(%arg0: i32, %arg1: i32) -> (i32, i32, i32) {
    %c0_i32 = arith.constant 0 : i32
    %c0_i32_0 = arith.constant 0 : i32
    return %arg0, %arg1, %c0_i32 : i32, i32, i32
  }
  func.func @transform_1(%arg0: i32, %arg1: i32) -> (i32, i32, i32) {
    %c0_i32 = arith.constant 0 : i32
    %c0_i32_0 = arith.constant 0 : i32
    %c0_i32_1 = arith.constant 0 : i32
    return %arg0, %c0_i32, %c0_i32_0 : i32, i32, i32
  }
  func.func @transform_2(%arg0: i32, %arg1: i32) -> (i32, i32, i32) {
    %c0_i32 = arith.constant 0 : i32
    %c0_i32_0 = arith.constant 0 : i32
    %c0_i32_1 = arith.constant 0 : i32
    return %c0_i32, %arg1, %c0_i32_0 : i32, i32, i32
  }
  func.func @transform_3(%arg0: i32, %arg1: i32) -> (i32, i32, i32) {
    %c0_i32 = arith.constant 0 : i32
    %c0_i32_0 = arith.constant 0 : i32
    return %arg0, %arg1, %c0_i32 : i32, i32, i32
  }
  func.func @transform_4(%arg0: i32, %arg1: i32) -> (i32, i32, i32) {
    %c0_i32 = arith.constant 0 : i32
    %c0_i32_0 = arith.constant 0 : i32
    return %arg0, %arg1, %c0_i32 : i32, i32, i32
  }
}

</mosaic_0001>

<llo_original>
// kernel: tpu_custom_call.1
$region0: #{tpu_custom_call.1}
  #allocation0 [shape = 'u32[]', space=smem, size = 0x4, offset = 0x4, fixed_abs, tag = 'smem constant byte address 0x4 - core index']
  #allocation1 [shape = 'u32[144,128]{1,0:T(1,128)}', space=vmem, size = 0x12000, scoped, tag = 'internal scratch']
  %s0 = inlined_call_operand.hbm [shape: f32[2,8,32], index: 0, kind: input, shape index: {}]
  %s1 = inlined_call_operand.hbm [shape: f32[2,8,32], index: 1, kind: input, shape index: {}]
  %s2 = inlined_call_operand.hbm [shape: f32[1,8,8], index: 2, kind: input, shape index: {}]
  %s3 = inlined_call_operand.hbm [shape: f32[2,8,32], index: 3, kind: output, shape index: {0}]
  %s4 = inlined_call_operand.hbm [shape: f32[2,8,8], index: 4, kind: output, shape index: {1}]
  %5 = xla_tuple %s3, %s4
  %s6 = sld [smem:[#allocation0]]
  $region65: #{tpu_custom_call.1} parent=0
    _
  %s8 = ssub.s32 1, %s6
  %s9 = scalar_select 0, %s8, %s6
  $region1: #{tpu_custom_call.1} parent=0
    #allocation2 [shape = 'u8[8192]{0}', space=vmem, size = 0x2000, scoped, tag = 'input window, operand 0']
    #allocation3 [shape = 's32[2]{0}', space=sflag, size = 0x8, scoped, tag = 'scoped memory for tpu_custom_call.1']
    #allocation4 [shape = 's32[2]{0}', space=sflag, size = 0x8, scoped, tag = 'scoped memory for tpu_custom_call.1']
    #allocation5 [shape = 'u8[8192]{0}', space=vmem, size = 0x2000, scoped, tag = 'input window, operand 1']
    #allocation6 [shape = 's32[2]{0}', space=sflag, size = 0x8, scoped, tag = 'scoped memory for tpu_custom_call.1']
    #allocation7 [shape = 'u8[4096]{0}', space=vmem, size = 0x1000, scoped, tag = 'input window, operand 2, single buffered']
    #allocation8 [shape = 'u8[8192]{0}', space=vmem, size = 0x2000, scoped, tag = 'output window, operand 0']
    #allocation9 [shape = 'u8[8192]{0}', space=vmem, size = 0x2000, scoped, tag = 'output window, operand 1']
    #allocation10 [shape = 's32[2]{0}', space=sflag, size = 0x8, scoped, tag = 'scoped memory for tpu_custom_call.1']
    %10 = vsyncpa [#allocation3], 0
    %s11 = scalar_lea.sflag [#allocation3], 1
    %12 = vsyncpa %s11, 0
    %13 = vsyncpa [#allocation6], 0
    %s14 = scalar_lea.sflag [#allocation6], 1
    %15 = vsyncpa %s14, 0
    %16 = vsyncpa [#allocation4], 0
    %s17 = scalar_lea.sflag [#allocation4], 1
    %18 = vsyncpa %s17, 0
    %19 = vsyncpa [#allocation10], 0
    %s20 = scalar_lea.sflag [#allocation10], 1
    %21 = vsyncpa %s20, 0
    loop: start=0, step=1, limit=4
    $region2: #{tpu_custom_call.1} parent=1 // loop_pre_header
      _
    $region3: #{tpu_custom_call.1} parent=1 // loop_header
      %s23 = sphi 0, %s27
      %p24 = scmp.ge.s32.totalorder %s23, 4
      %s30 = sphi 0, %s42
      %s31 = sphi 0, %s38
      %s32 = sphi 0, %s30
      %s33 = sphi 0, %s31
      %s34 = sphi 0, %s32
      %s35 = sphi 0, %s33
      %s47 = sphi 0, %s49
      %s50 = sphi 0, %s47
      %s51 = sphi 0, %s50
      %s67 = sphi 0, %s51
      %s73 = sphi 0, %s75
      %s76 = sphi 0, %s73
      %s77 = sphi 0, %s76
      %s93 = sphi 0, %s77
      %s99 = sphi 0, %s101
      %s102 = sphi 0, %s99
      %s103 = sphi 0, %s102
      %s119 = sphi 0, %s103
      %s127 = sphi 0, %s129
      %s130 = sphi 0, %s127
      %s131 = sphi 0, %s130
      %s147 = sphi 0, %s131
      %s155 = sphi 0, %s157
      %s158 = sphi 0, %s155
      %s159 = sphi 0, %s158
      %s175 = sphi 0, %s159
    $region4: #{tpu_custom_call.1} parent=1 // loop_header_branch
      %26 = sbr.rel (%p24) target = $region8
    $region5: #{tpu_custom_call.1} parent=1 // loop_body
      %s28 = ssub.s32 %s23, 1
      %s29 = ssub.s32 %s23, 2
      %s36 = sadd.s32 1, %s31
      %p37 = scmp.ge.s32.totalorder %s36, 1
      %s38 = scalar_select %p37, 0, %s36
      %s39 = sadd.s32 1, %s30
      %s40 = scalar_select %p37, %s39, %s30
      %p41 = scmp.ge.s32.totalorder %s40, 2
      %s42 = scalar_select %p41, 0, %s40
      %s43 = ssub.s32 %s30, %s42
      %s44 = ssub.s32 %s31, %s38
      %s45 = sor.u32 %s43, %s44
      %p46 = scmp.eq.s32.totalorder %s45, 0
      %s48 = sadd.s32 %s47, 1
      %s49 = scalar_select %p46, %s47, %s48
      %p52 = pneg %p46
      %p53 = scmp.eq.s32.totalorder %s23, 1
      %p54 = por %p52, %p53
      %p55 = scmp.ne.s32.totalorder %s47, %s50
      %p56 = scmp.eq.s32.totalorder %s23, 0
      %p57 = por %p55, %p56
      %p58 = scmp.ne.s32.totalorder %s47, %s50
      %p59 = scmp.eq.s32.totalorder %s28, 1
      %p60 = por %p58, %p59
      %p61 = scmp.ne.s32.totalorder %s50, %s51
      %p62 = scmp.eq.s32.totalorder %s28, 0
      %p63 = por %p61, %p62
      %p64 = scmp.ne.s32.totalorder %s50, %s51
      %p65 = scmp.eq.s32.totalorder %s29, 1
      %p66 = por %p64, %p65
      %p68 = scmp.ne.s32.totalorder %s51, %s67
      %p69 = scmp.eq.s32.totalorder %s29, 0
      %p70 = por %p68, %p69
      %s71 = ssub.s32 %s30, %s42
      %p72 = scmp.eq.s32.totalorder %s71, 0
      %s74 = sadd.s32 %s73, 1
      %s75 = scalar_select %p72, %s73, %s74
      %p78 = pneg %p72
      %p79 = scmp.eq.s32.totalorder %s23, 1
      %p80 = por %p78, %p79
      %p81 = scmp.ne.s32.totalorder %s73, %s76
      %p82 = scmp.eq.s32.totalorder %s23, 0
      %p83 = por %p81, %p82
      %p84 = scmp.ne.s32.totalorder %s73, %s76
      %p85 = scmp.eq.s32.totalorder %s28, 1
      %p86 = por %p84, %p85
      %p87 = scmp.ne.s32.totalorder %s76, %s77
      %p88 = scmp.eq.s32.totalorder %s28, 0
      %p89 = por %p87, %p88
      %p90 = scmp.ne.s32.totalorder %s76, %s77
      %p91 = scmp.eq.s32.totalorder %s29, 1
      %p92 = por %p90, %p91
      %p94 = scmp.ne.s32.totalorder %s77, %s93
      %p95 = scmp.eq.s32.totalorder %s29, 0
      %p96 = por %p94, %p95
      %s97 = ssub.s32 %s31, %s38
      %p98 = scmp.eq.s32.totalorder %s97, 0
      %s100 = sadd.s32 %s99, 1
      %s101 = scalar_select %p98, %s99, %s100
      %p104 = pneg %p98
      %p105 = scmp.eq.s32.totalorder %s23, 1
      %p106 = por %p104, %p105
      %p107 = scmp.ne.s32.totalorder %s99, %s102
      %p108 = scmp.eq.s32.totalorder %s23, 0
      %p109 = por %p107, %p108
      %p110 = scmp.ne.s32.totalorder %s99, %s102
      %p111 = scmp.eq.s32.totalorder %s28, 1
      %p112 = por %p110, %p111
      %p113 = scmp.ne.s32.totalorder %s102, %s103
      %p114 = scmp.eq.s32.totalorder %s28, 0
      %p115 = por %p113, %p114
      %p116 = scmp.ne.s32.totalorder %s102, %s103
      %p117 = scmp.eq.s32.totalorder %s29, 1
      %p118 = por %p116, %p117
      %p120 = scmp.ne.s32.totalorder %s103, %s119
      %p121 = scmp.eq.s32.totalorder %s29, 0
      %p122 = por %p120, %p121
      %s123 = ssub.s32 %s30, %s42
      %s124 = ssub.s32 %s31, %s38
      %s125 = sor.u32 %s123, %s124
      %p126 = scmp.eq.s32.totalorder %s125, 0
      %s128 = sadd.s32 %s127, 1
      %s129 = scalar_select %p126, %s127, %s128
      %p132 = pneg %p126
      %p133 = scmp.eq.s32.totalorder %s23, 1
      %p134 = por %p132, %p133
      %p135 = scmp.ne.s32.totalorder %s127, %s130
      %p136 = scmp.eq.s32.totalorder %s23, 0
      %p137 = por %p135, %p136
      %p138 = scmp.ne.s32.totalorder %s127, %s130
      %p139 = scmp.eq.s32.totalorder %s28, 1
      %p140 = por %p138, %p139
      %p141 = scmp.ne.s32.totalorder %s130, %s131
      %p142 = scmp.eq.s32.totalorder %s28, 0
      %p143 = por %p141, %p142
      %p144 = scmp.ne.s32.totalorder %s130, %s131
      %p145 = scmp.eq.s32.totalorder %s29, 1
      %p146 = por %p144, %p145
      %p148 = scmp.ne.s32.totalorder %s131, %s147
      %p149 = scmp.eq.s32.totalorder %s29, 0
      %p150 = por %p148, %p149
      %s151 = ssub.s32 %s30, %s42
      %s152 = ssub.s32 %s31, %s38
      %s153 = sor.u32 %s151, %s152
      %p154 = scmp.eq.s32.totalorder %s153, 0
      %s156 = sadd.s32 %s155, 1
      %s157 = scalar_select %p154, %s155, %s156
      %p160 = pneg %p154
      %p161 = scmp.eq.s32.totalorder %s23, 1
      %p162 = por %p160, %p161
      %p163 = scmp.ne.s32.totalorder %s155, %s158
      %p164 = scmp.eq.s32.totalorder %s23, 0
      %p165 = por %p163, %p164
      %p166 = scmp.ne.s32.totalorder %s155, %s158
      %p167 = scmp.eq.s32.totalorder %s28, 1
      %p168 = por %p166, %p167
      %p169 = scmp.ne.s32.totalorder %s158, %s159
      %p170 = scmp.eq.s32.totalorder %s28, 0
      %p171 = por %p169, %p170
      %p172 = scmp.ne.s32.totalorder %s158, %s159
      %p173 = scmp.eq.s32.totalorder %s29, 1
      %p174 = por %p172, %p173
      %p176 = scmp.ne.s32.totalorder %s159, %s175
      %p177 = scmp.eq.s32.totalorder %s29, 0
      %p178 = por %p176, %p177
      %p179 = scmp.le.s32.totalorder 1, %s23
      %p180 = scmp.lt.s32.totalorder %s23, 3
      %p181 = pnand %p179, %p180
      %p182 = pneg %p181
      // Predicated region
      $region9: #{tpu_custom_call.1} parent=5 // pred_check
        _
      $region10: #{tpu_custom_call.1} parent=5 // pred_check_branch
        %184 = sbr.rel (%p181) target = $region12
      $region11: #{tpu_custom_call.1} parent=5 // pred_region
        %s185 = ssub.s32 %s23, 1
        // Predicated region
        $region13: #{tpu_custom_call.1} parent=11 // pred_check
          %p186 = pneg %p115
        $region14: #{tpu_custom_call.1} parent=11 // pred_check_branch
          %188 = sbr.rel (%p186) target = $region16
        $region15: #{tpu_custom_call.1} parent=11 // pred_region
          %s190 = ssub.s32 128, 128
          %191 = vsyncadd [#allocation6], %s190
          %s192 = smul.addr %s33, 128
          %s193 = scalar_lea.hbm %s2, %s192
          %s195 = sshll.u32 [#allocation7], 4
          %s196 = int_to_ptr.vmem [resolvable:$true] %s195
          %198 = dma.hbm_to_vmem [thread:$0]  %s193, 128, %s196, [#allocation6]
        $region16: #{tpu_custom_call.1} parent=11 // pred_fallthru
          _
      $region12: #{tpu_custom_call.1} parent=5 // pred_fallthru
        _
      %p199 = scmp.lt.s32.totalorder %s23, 2
      // Predicated region
      $region17: #{tpu_custom_call.1} parent=5 // pred_check
        %p200 = pneg %p199
      $region18: #{tpu_custom_call.1} parent=5 // pred_check_branch
        %202 = sbr.rel (%p200) target = $region20
      $region19: #{tpu_custom_call.1} parent=5 // pred_region
        // Predicated region
        $region21: #{tpu_custom_call.1} parent=19 // pred_check
          %p203 = pneg %p57
        $region22: #{tpu_custom_call.1} parent=19 // pred_check_branch
          %205 = sbr.rel (%p203) target = $region24
        $region23: #{tpu_custom_call.1} parent=19 // pred_region
          %s206 = sand.u32 %s47, 1
          %s207 = scalar_lea.sflag [#allocation3], %s206
          %s208 = sand.u32 %s47, 1
          %s209 = smul.addr %s208, 8
          %s210 = scalar_lea.vmem [#allocation2], %s209
          %s212 = ssub.s32 128, 128
          %213 = vsyncadd %s207, %s212
          %s214 = sadd.s32 %s31, %s30
          %s215 = smul.addr %s214, 128
          %s216 = scalar_lea.hbm %s0, %s215
          %s218 = sshll.u32 %s210, 4
          %s219 = int_to_ptr.vmem [resolvable:$true] %s218
          %221 = dma.hbm_to_vmem [thread:$0]  %s216, 128, %s219, %s207
        $region24: #{tpu_custom_call.1} parent=19 // pred_fallthru
          _
        // Predicated region
        $region25: #{tpu_custom_call.1} parent=19 // pred_check
          %p222 = pneg %p83
        $region26: #{tpu_custom_call.1} parent=19 // pred_check_branch
          %224 = sbr.rel (%p222) target = $region28
        $region27: #{tpu_custom_call.1} parent=19 // pred_region
          %s225 = sand.u32 %s23, 1
          %s226 = scalar_lea.sflag [#allocation6], %s225
          %s227 = sand.u32 %s73, 1
          %s228 = smul.addr %s227, 8
          %s229 = scalar_lea.vmem [#allocation5], %s228
          %s231 = ssub.s32 128, 128
          %232 = vsyncadd %s226, %s231
          %s233 = smul.addr %s30, 128
          %s234 = scalar_lea.hbm %s1, %s233
          %s236 = sshll.u32 %s229, 4
          %s237 = int_to_ptr.vmem [resolvable:$true] %s236
          %239 = dma.hbm_to_vmem [thread:$0]  %s234, 128, %s237, %s226
        $region28: #{tpu_custom_call.1} parent=19 // pred_fallthru
          _
      $region20: #{tpu_custom_call.1} parent=5 // pred_fallthru
        _
      %p240 = scmp.le.s32.totalorder 1, %s23
      %p241 = scmp.lt.s32.totalorder %s23, 3
      %p242 = pnand %p240, %p241
      %p243 = pneg %p242
      // Predicated region
      $region29: #{tpu_custom_call.1} parent=5 // pred_check
        _
      $region30: #{tpu_custom_call.1} parent=5 // pred_check_branch
        %245 = sbr.rel (%p242) target = $region32
      $region31: #{tpu_custom_call.1} parent=5 // pred_region
        %s246 = ssub.s32 %s23, 1
        %s247 = sand.u32 %s50, 1
        %s248 = scalar_lea.sflag [#allocation3], %s247
        %s249 = sand.u32 %s50, 1
        %s250 = smul.addr %s249, 8
        %s251 = scalar_lea.vmem [#allocation2], %s250
        // Predicated region
        $region33: #{tpu_custom_call.1} parent=31 // pred_check
          %p252 = pneg %p63
        $region34: #{tpu_custom_call.1} parent=31 // pred_check_branch
          %254 = sbr.rel (%p252) target = $region36
        $region35: #{tpu_custom_call.1} parent=31 // pred_region
          %255 = dma.done %s248, 128
        $region36: #{tpu_custom_call.1} parent=31 // pred_fallthru
          _
        %s256 = sand.u32 %s28, 1
        %s257 = scalar_lea.sflag [#allocation6], %s256
        %s258 = sand.u32 %s76, 1
        %s259 = smul.addr %s258, 8
        %s260 = scalar_lea.vmem [#allocation5], %s259
        // Predicated region
        $region37: #{tpu_custom_call.1} parent=31 // pred_check
          %p261 = pneg %p89
        $region38: #{tpu_custom_call.1} parent=31 // pred_check_branch
          %263 = sbr.rel (%p261) target = $region40
        $region39: #{tpu_custom_call.1} parent=31 // pred_region
          %264 = dma.done %s257, 128
        $region40: #{tpu_custom_call.1} parent=31 // pred_fallthru
          _
        // Predicated region
        $region41: #{tpu_custom_call.1} parent=31 // pred_check
          %p265 = pneg %p115
        $region42: #{tpu_custom_call.1} parent=31 // pred_check_branch
          %267 = sbr.rel (%p265) target = $region44
        $region43: #{tpu_custom_call.1} parent=31 // pred_region
          %268 = dma.done [#allocation6], 128
        $region44: #{tpu_custom_call.1} parent=31 // pred_fallthru
          _
        %s269 = sand.u32 %s50, 1
        %s270 = scalar_lea.sflag [#allocation3], %s269
        %s271 = sand.u32 %s50, 1
        %s272 = smul.addr %s271, 8
        %s273 = scalar_lea.vmem [#allocation2], %s272
        %p274 = pneg %p63
        %p275 = pneg %p60
        %s276 = sand.u32 %s28, 1
        %s277 = scalar_lea.sflag [#allocation6], %s276
        %s278 = sand.u32 %s76, 1
        %s279 = smul.addr %s278, 8
        %s280 = scalar_lea.vmem [#allocation5], %s279
        %p281 = pneg %p89
        %p282 = pneg %p86
        %p283 = pneg %p115
        %p284 = pneg %p112
        %p285 = pneg %p143
        %p286 = pneg %p140
        %s287 = sand.u32 %s130, 1
        %s288 = scalar_lea.sflag [#allocation4], %s287
        %s289 = sand.u32 %s130, 1
        %s290 = smul.addr %s289, 8
        %s291 = scalar_lea.vmem [#allocation8], %s290
        %p292 = pneg %p171
        %p293 = pneg %p168
        %s294 = sand.u32 %s158, 1
        %s295 = scalar_lea.sflag [#allocation10], %s294
        %s296 = sand.u32 %s158, 1
        %s297 = smul.addr %s296, 8
        %s298 = scalar_lea.vmem [#allocation9], %s297
        %v299 = vld [vmem:[#allocation7] sm:$0xff]
        %v300 = vld [vmem:[%s251] sm:$0xff]
        %v301 = vld [vmem:[%s260] sm:$0xff]
        %v302 = vmul.f32 %v300, 0.17677669
        %vm303 = vcmask 261120
        %v305 = vsel %vm303, %v302, 0
        %v308 = vsel %vm303, %v301, 0
        %310 = vmatprep.subr.mxu0 0.0
        %311 = vmatpush1.xpose.msra.mxu0 0.0
        %312 = vmatprep.subr.mxu0 0.0
        %313 = vmatpush1.xpose.msra.mxu0 0.0
        %314 = vmatprep.subr.mxu0 0.0
        %315 = vmatpush1.xpose.msra.mxu0 0.0
        %316 = vmatprep.subr.mxu0 0.0
        %317 = vmatpush1.xpose.msra.mxu0 0.0
        %318 = vmatprep.subr.mxu0 0.0
        %319 = vmatpush1.xpose.msra.mxu0 0.0
        %320 = vmatprep.subr.mxu0 0.0
        %321 = vmatpush1.xpose.msra.mxu0 0.0
        %322 = vmatprep.subr.mxu0 0.0
        %323 = vmatpush1.xpose.msra.mxu0 0.0
        %324 = vmatprep.subr.mxu0 0.0
        %325 = vmatpush1.xpose.msra.mxu0 0.0
        %326 = vmatprep.subr.mxu0 0.0
        %327 = vmatpush1.xpose.msra.mxu0 0.0
        %328 = vmatprep.subr.mxu0 0.0
        %329 = vmatpush1.xpose.msra.mxu0 0.0
        %330 = vmatprep.subr.mxu0 0.0
        %331 = vmatpush1.xpose.msra.mxu0 0.0
        %332 = vmatprep.subr.mxu0 0.0
        %333 = vmatpush1.xpose.msra.mxu0 0.0
        %334 = vmatprep.subr.mxu0 0.0
        %335 = vmatpush1.xpose.msra.mxu0 0.0
        %336 = vmatprep.subr.mxu0 0.0
        %337 = vmatpush1.xpose.msra.mxu0 0.0
        %338 = vmatprep.subr.mxu0 0.0
        %339 = vmatpush1.xpose.msra.mxu0 0.0
        %340 = vmatprep.subr.mxu0 0.0
        %341 = vmatpush1.xpose.msra.mxu0 %v308
        %342 = vmatprep.subr.mxu0 0.0
        %343 = vmatpush2.xpose.msra.mxu0 0.0
        %344 = vmatprep.subr.mxu0 0.0
        %345 = vmatpush2.xpose.msra.mxu0 0.0
        %346 = vmatprep.subr.mxu0 0.0
        %347 = vmatpush2.xpose.msra.mxu0 0.0
        %348 = vmatprep.subr.mxu0 0.0
        %349 = vmatpush2.xpose.msra.mxu0 0.0
        %350 = vmatprep.subr.mxu0 0.0
        %351 = vmatpush2.xpose.msra.mxu0 0.0
        %352 = vmatprep.subr.mxu0 0.0
        %353 = vmatpush2.xpose.msra.mxu0 0.0
        %354 = vmatprep.subr.mxu0 0.0
        %355 = vmatpush2.xpose.msra.mxu0 0.0
        %356 = vmatprep.subr.mxu0 0.0
        %357 = vmatpush2.xpose.msra.mxu0 0.0
        %358 = vmatprep.subr.mxu0 0.0
        %359 = vmatpush2.xpose.msra.mxu0 0.0
        %360 = vmatprep.subr.mxu0 0.0
        %361 = vmatpush2.xpose.msra.mxu0 0.0
        %362 = vmatprep.subr.mxu0 0.0
        %363 = vmatpush2.xpose.msra.mxu0 0.0
        %364 = vmatprep.subr.mxu0 0.0
        %365 = vmatpush2.xpose.msra.mxu0 0.0
        %366 = vmatprep.subr.mxu0 0.0
        %367 = vmatpush2.xpose.msra.mxu0 0.0
        %368 = vmatprep.subr.mxu0 0.0
        %369 = vmatpush2.xpose.msra.mxu0 0.0
        %370 = vmatprep.subr.mxu0 0.0
        %371 = vmatpush2.xpose.msra.mxu0 0.0
        %372 = vmatprep.subr.mxu0 0.0
        %373 = vmatpush2.xpose.msra.mxu0 0.0
        %374 = vmatprep.mubr.f32.mxu0 0.0
        %375 = vmatmul.mubr.f32.gmra.mxu0 %v305
        %v376 = vpop.f32.mrf.mxu0
        %v377 = vadd.f32 %v299, %v376
        %v378 = vpop.f32.mrf.mxu0
        %379 = vdwg.mxu0
        %vm380 = vcmask 64512
        %v381 = vsel %vm380, %v377, -inf
        %382 = vmax.xlane.f32.xlu0 %v381
        %v383 = vpop.xlane.xlu0 %382
        %v384 = vsub.f32 %v377, %v383
        %v385 = vmul.f32 %v384, 1.442695
        %v386 = vpow.pop %v385
        %v387 = vsel %vm380, %v386, 0.0
        %388 = vadd.xlane.f32.xlu0 %v387
        %v389 = vpop.xlane.xlu0 %388
        %v390 = vrcp.pop %v389
        %v391 = vmul.f32 %v389, %v390
        %v392 = vsub.f32 2.0, %v391
        %v393 = vmul.f32 %v390, %v392
        %v394 = vmul.f32 %v386, %v393
        %v396 = vsel %vm380, %v394, 0
        %398 = vmatprep.subr.mxu0 0.0
        %399 = vmatpush1.msra.mxu0 0.0
        %400 = vmatprep.subr.mxu0 0.0
        %401 = vmatpush1.msra.mxu0 0.0
        %402 = vmatprep.subr.mxu0 0.0
        %403 = vmatpush1.msra.mxu0 0.0
        %404 = vmatprep.subr.mxu0 0.0
        %405 = vmatpush1.msra.mxu0 0.0
        %406 = vmatprep.subr.mxu0 0.0
        %407 = vmatpush1.msra.mxu0 0.0
        %408 = vmatprep.subr.mxu0 0.0
        %409 = vmatpush1.msra.mxu0 0.0
        %410 = vmatprep.subr.mxu0 0.0
        %411 = vmatpush1.msra.mxu0 0.0
        %412 = vmatprep.subr.mxu0 0.0
        %413 = vmatpush1.msra.mxu0 0.0
        %414 = vmatprep.subr.mxu0 0.0
        %415 = vmatpush1.msra.mxu0 0.0
        %416 = vmatprep.subr.mxu0 0.0
        %417 = vmatpush1.msra.mxu0 0.0
        %418 = vmatprep.subr.mxu0 0.0
        %419 = vmatpush1.msra.mxu0 0.0
        %420 = vmatprep.subr.mxu0 0.0
        %421 = vmatpush1.msra.mxu0 0.0
        %422 = vmatprep.subr.mxu0 0.0
        %423 = vmatpush1.msra.mxu0 0.0
        %424 = vmatprep.subr.mxu0 0.0
        %425 = vmatpush1.msra.mxu0 0.0
        %426 = vmatprep.subr.mxu0 0.0
        %427 = vmatpush1.msra.mxu0 0.0
        %428 = vmatprep.subr.mxu0 0.0
        %429 = vmatpush1.msra.mxu0 %v301
        %430 = vmatprep.subr.mxu0 0.0
        %431 = vmatpush2.msra.mxu0 0.0
        %432 = vmatprep.subr.mxu0 0.0
        %433 = vmatpush2.msra.mxu0 0.0
        %434 = vmatprep.subr.mxu0 0.0
        %435 = vmatpush2.msra.mxu0 0.0
        %436 = vmatprep.subr.mxu0 0.0
        %437 = vmatpush2.msra.mxu0 0.0
        %438 = vmatprep.subr.mxu0 0.0
        %439 = vmatpush2.msra.mxu0 0.0
        %440 = vmatprep.subr.mxu0 0.0
        %441 = vmatpush2.msra.mxu0 0.0
        %442 = vmatprep.subr.mxu0 0.0
        %443 = vmatpush2.msra.mxu0 0.0
        %444 = vmatprep.subr.mxu0 0.0
        %445 = vmatpush2.msra.mxu0 0.0
        %446 = vmatprep.subr.mxu0 0.0
        %447 = vmatpush2.msra.mxu0 0.0
        %448 = vmatprep.subr.mxu0 0.0
        %449 = vmatpush2.msra.mxu0 0.0
        %450 = vmatprep.subr.mxu0 0.0
        %451 = vmatpush2.msra.mxu0 0.0
        %452 = vmatprep.subr.mxu0 0.0
        %453 = vmatpush2.msra.mxu0 0.0
        %454 = vmatprep.subr.mxu0 0.0
        %455 = vmatpush2.msra.mxu0 0.0
        %456 = vmatprep.subr.mxu0 0.0
        %457 = vmatpush2.msra.mxu0 0.0
        %458 = vmatprep.subr.mxu0 0.0
        %459 = vmatpush2.msra.mxu0 0.0
        %460 = vmatprep.subr.mxu0 0.0
        %461 = vmatpush2.msra.mxu0 0.0
        %462 = vmatprep.mubr.f32.mxu0 0.0
        %463 = vmatmul.mubr.f32.gmra.mxu0 %v396
        %v464 = vpop.f32.mrf.mxu0
        %v465 = vadd.f32 0.0, %v464
        %v466 = vpop.f32.mrf.mxu0
        %467 = vdwg.mxu0
        %468 = vst.msk [vmem:[%s291] sm:$0xff] %vm303, %v465
        %469 = vst.msk [vmem:[%s298] sm:$0xff] %vm380, %v394
        %s470 = sand.u32 %s130, 1
        %s471 = scalar_lea.sflag [#allocation4], %s470
        %s472 = sand.u32 %s130, 1
        %s473 = smul.addr %s472, 8
        %s474 = scalar_lea.vmem [#allocation8], %s473
        %s475 = sand.u32 %s158, 1
        %s476 = scalar_lea.sflag [#allocation10], %s475
        %s477 = sand.u32 %s158, 1
        %s478 = smul.addr %s477, 8
        %s479 = scalar_lea.vmem [#allocation9], %s478
        // Predicated region
        $region45: #{tpu_custom_call.1} parent=31 // pred_check
          %p480 = pneg %p140
        $region46: #{tpu_custom_call.1} parent=31 // pred_check_branch
          %482 = sbr.rel (%p480) target = $region48
        $region47: #{tpu_custom_call.1} parent=31 // pred_region
          %s484 = ssub.s32 128, 128
          %485 = vsyncadd %s471, %s484
          %s486 = sadd.s32 %s33, %s32
          %s487 = smul.addr %s486, 128
          %s488 = scalar_lea.hbm %s3, %s487
          %s490 = sshll.u32 %s474, 4
          %s491 = int_to_ptr.vmem [resolvable:$true] %s490
          %493 = dma.vmem_to_hbm [thread:$0]  %s491, 128, %s488, %s471
        $region48: #{tpu_custom_call.1} parent=31 // pred_fallthru
          _
        // Predicated region
        $region49: #{tpu_custom_call.1} parent=31 // pred_check
          %p494 = pneg %p168
        $region50: #{tpu_custom_call.1} parent=31 // pred_check_branch
          %496 = sbr.rel (%p494) target = $region52
        $region51: #{tpu_custom_call.1} parent=31 // pred_region
          %s498 = ssub.s32 128, 128
          %499 = vsyncadd %s476, %s498
          %s500 = sadd.s32 %s33, %s32
          %s501 = smul.addr %s500, 128
          %s502 = scalar_lea.hbm %s4, %s501
          %s504 = sshll.u32 %s479, 4
          %s505 = int_to_ptr.vmem [resolvable:$true] %s504
          %507 = dma.vmem_to_hbm [thread:$0]  %s505, 128, %s502, %s476
        $region52: #{tpu_custom_call.1} parent=31 // pred_fallthru
          _
      $region32: #{tpu_custom_call.1} parent=5 // pred_fallthru
        _
      %p508 = scmp.le.s32.totalorder 2, %s23
      // Predicated region
      $region53: #{tpu_custom_call.1} parent=5 // pred_check
        %p509 = pneg %p508
      $region54: #{tpu_custom_call.1} parent=5 // pred_check_branch
        %511 = sbr.rel (%p509) target = $region56
      $region55: #{tpu_custom_call.1} parent=5 // pred_region
        %s512 = ssub.s32 %s23, 2
        // Predicated region
        $region57: #{tpu_custom_call.1} parent=55 // pred_check
          %p513 = pneg %p146
        $region58: #{tpu_custom_call.1} parent=55 // pred_check_branch
          %515 = sbr.rel (%p513) target = $region60
        $region59: #{tpu_custom_call.1} parent=55 // pred_region
          %s516 = sand.u32 %s131, 1
          %s517 = scalar_lea.sflag [#allocation4], %s516
          %s518 = sand.u32 %s131, 1
          %s519 = smul.addr %s518, 8
          %s520 = scalar_lea.vmem [#allocation8], %s519
          %521 = dma.done %s517, 128
        $region60: #{tpu_custom_call.1} parent=55 // pred_fallthru
          _
        // Predicated region
        $region61: #{tpu_custom_call.1} parent=55 // pred_check
          %p522 = pneg %p174
        $region62: #{tpu_custom_call.1} parent=55 // pred_check_branch
          %524 = sbr.rel (%p522) target = $region64
        $region63: #{tpu_custom_call.1} parent=55 // pred_region
          %s525 = sand.u32 %s159, 1
          %s526 = scalar_lea.sflag [#allocation10], %s525
          %s527 = sand.u32 %s159, 1
          %s528 = smul.addr %s527, 8
          %s529 = scalar_lea.vmem [#allocation9], %s528
          %530 = dma.done %s526, 128
        $region64: #{tpu_custom_call.1} parent=55 // pred_fallthru
          _
      $region56: #{tpu_custom_call.1} parent=5 // pred_fallthru
        _
    $region6: #{tpu_custom_call.1} parent=1 // loop_footer
      %s27 = sadd.s32 1, %s23
    $region7: #{tpu_custom_call.1} parent=1 // loop_footer_branch
      %22 = sbr.rel target = $region3
    $region8: #{tpu_custom_call.1} parent=1 // loop_exit
      _
    %531 = vsyncpa [#allocation3], 1
    %s532 = scalar_lea.sflag [#allocation3], 1
    %533 = vsyncpa %s532, 1
    %534 = vsyncpa [#allocation6], 1
    %s535 = scalar_lea.sflag [#allocation6], 1
    %536 = vsyncpa %s535, 1
    %537 = vsyncpa [#allocation4], 1
    %s538 = scalar_lea.sflag [#allocation4], 1
    %539 = vsyncpa %s538, 1
    %540 = vsyncpa [#allocation10], 1
    %s541 = scalar_lea.sflag [#allocation10], 1
    %542 = vsyncpa %s541, 1

</llo_original>
